<compile_context>
chip_gen: v6e
topology: v6e:2x2x1
jax: 0.10.0
libtpu: 0.0.40
codegen_flags: <defaults>
</compile_context>

<pallas_src>
import functools

import jax
import jax.numpy as jnp
from jax.experimental import pallas as pl
from jax.experimental.pallas import tpu as pltpu


# ----------------------------- tiling helpers -------------------------------


def _sublane_tile(dim, target):
    """Largest divisor of `dim` <= target that is a multiple of 8 (else dim itself)."""
    if dim <= target:
        return dim
    for t in range(target, 7, -1):
        if dim % t == 0 and t % 8 == 0:
            return t
    return dim


def _lane_tile(dim, target):
    """Largest divisor of `dim` <= target that is a multiple of 128 (else dim itself)."""
    if dim <= target:
        return dim
    for t in range(target, 127, -1):
        if dim % t == 0 and t % 128 == 0:
            return t
    return dim


# ----------------------------- Pallas kernels ------------------------------


def _linear_residual_kernel(x_ref, w_ref, b_ref, r_ref, o_ref):
    # Matmul (bf16 operands -> MXU) + bias + residual add, epilogue math in f32.
    y = jnp.dot(x_ref[...], w_ref[...], preferred_element_type=jnp.float32)
    y = y + b_ref[...] + r_ref[...].astype(jnp.float32)
    o_ref[...] = y.astype(o_ref.dtype)


def pallas_linear_residual(x, w, b, residual, *, out_dtype=jnp.bfloat16, tm=256, tn=512):
    """Used for patch embedding: patches @ W + b + pos_emb."""
    M, K = x.shape
    N = w.shape[1]
    TM = _sublane_tile(M, tm)
    TN = _lane_tile(N, tn)
    return pl.pallas_call(
        _linear_residual_kernel,
        out_shape=jax.ShapeDtypeStruct((M, N), out_dtype),
        grid=(M // TM, N // TN),
        in_specs=[
            pl.BlockSpec((TM, K), lambda i, j: (i, 0)),
            pl.BlockSpec((K, TN), lambda i, j: (0, j)),   # weight: invariant along M tiles
            pl.BlockSpec((1, TN), lambda i, j: (0, j)),
            pl.BlockSpec((TM, TN), lambda i, j: (i, j)),  # residual (pos emb)
        ],
        out_specs=pl.BlockSpec((TM, TN), lambda i, j: (i, j)),
        compiler_params=pltpu.CompilerParams(
            dimension_semantics=("parallel", "parallel")),
    )(x, w, b.reshape(1, N), residual)


def _attn_block_kernel(x_ref, g_ref, bln_ref, wqkv_ref, bqkv_ref, wo_ref, bo_ref,
                       o_ref, acc_ref, *, heads, scale, eps):
    # Whole pre-LN attention block for one batch row:
    #   out = x + (softmax(LN(x)Wq (LN(x)Wk)^T * scale) LN(x)Wv) Wo + bo
    # x_ref: (1, S, D), wqkv laid out as [q | k | v] on the lane axis (heads contiguous).
    D = o_ref.shape[2]
    dh = D // heads

    x = x_ref[0].astype(jnp.float32)                            # (S, D) residual, f32
    mean = jnp.mean(x, axis=-1, keepdims=True)
    var = jnp.mean(jnp.square(x - mean), axis=-1, keepdims=True)
    xn = (x - mean) * jax.lax.rsqrt(var + eps)
    xn = xn * g_ref[...] + bln_ref[...]

    qkv = jnp.dot(xn.astype(jnp.bfloat16), wqkv_ref[...],
                  preferred_element_type=jnp.float32) + bqkv_ref[...]
    qkv = qkv.astype(jnp.bfloat16)                              # (S, 3D)

    for h in range(heads):                                      # static unroll over heads
        lo = h * dh
        qh = qkv[:, lo:lo + dh]
        kh = qkv[:, D + lo:D + lo + dh]
        vh = qkv[:, 2 * D + lo:2 * D + lo + dh]
        # scores = q @ k^T (contract head dim without explicit transpose) -> f32
        s = jax.lax.dot_general(
            qh, kh, (((1,), (1,)), ((), ())), preferred_element_type=jnp.float32
        ) * scale
        s = s - jnp.max(s, axis=-1, keepdims=True)
        p = jnp.exp(s)
        l = jnp.sum(p, axis=-1, keepdims=True)
        acc = jnp.dot(p.astype(jnp.bfloat16), vh, preferred_element_type=jnp.float32)
        acc_ref[:, lo:lo + dh] = acc * pl.reciprocal(l, approx=True)

    # o-projection + residual, single lane-dense store of the block output.
    attn = acc_ref[...].astype(jnp.bfloat16)                    # (S, D), heads packed
    y = jnp.dot(attn, wo_ref[...], preferred_element_type=jnp.float32)
    o_ref[0] = (y + bo_ref[...] + x).astype(o_ref.dtype)


def pallas_attn_block(x, g, bln, wqkv, bqkv, wo, bo, *, heads, eps=1e-5,
                      out_dtype=jnp.bfloat16):
    B, S, D = x.shape
    scale = 1.0 / float(D // heads) ** 0.5
    kern = functools.partial(_attn_block_kernel, heads=heads, scale=scale, eps=eps)
    return pl.pallas_call(
        kern,
        out_shape=jax.ShapeDtypeStruct((B, S, D), out_dtype),
        grid=(B,),
        in_specs=[
            pl.BlockSpec((1, S, D), lambda b: (b, 0, 0)),       # residual input
            pl.BlockSpec((1, D), lambda b: (0, 0)),             # LN gamma (grid-invariant)
            pl.BlockSpec((1, D), lambda b: (0, 0)),             # LN beta
            pl.BlockSpec((D, 3 * D), lambda b: (0, 0)),         # fused QKV weight
            pl.BlockSpec((1, 3 * D), lambda b: (0, 0)),         # fused QKV bias
            pl.BlockSpec((D, D), lambda b: (0, 0)),             # o-proj weight
            pl.BlockSpec((1, D), lambda b: (0, 0)),             # o-proj bias
        ],
        out_specs=pl.BlockSpec((1, S, D), lambda b: (b, 0, 0)),
        scratch_shapes=[pltpu.VMEM((S, D), jnp.float32)],
        compiler_params=pltpu.CompilerParams(dimension_semantics=("parallel",)),
    )(x, g.reshape(1, D), bln.reshape(1, D), wqkv, bqkv.reshape(1, 3 * D),
      wo, bo.reshape(1, D))


def _mlp_block_kernel(x_ref, g_ref, bln_ref, w1_ref, b1_ref, w2_ref, b2_ref, o_ref, *, eps):
    # Whole pre-LN MLP block: out = x + GELU(LN(x) W1 + b1) W2 + b2
    x = x_ref[...].astype(jnp.float32)                          # (TM, D)
    mean = jnp.mean(x, axis=-1, keepdims=True)
    var = jnp.mean(jnp.square(x - mean), axis=-1, keepdims=True)
    xn = (x - mean) * jax.lax.rsqrt(var + eps)
    xn = xn * g_ref[...] + bln_ref[...]
    h1 = jnp.dot(xn.astype(jnp.bfloat16), w1_ref[...],
                 preferred_element_type=jnp.float32) + b1_ref[...]
    # TODO(synk): PyTorch nn.GELU defaults to the exact erf form; the tanh
    # approximation is used here (erf lowering is not guaranteed in Mosaic).
    h1 = jax.nn.gelu(h1)
    y = jnp.dot(h1.astype(jnp.bfloat16), w2_ref[...], preferred_element_type=jnp.float32)
    o_ref[...] = (y + b2_ref[...] + x).astype(o_ref.dtype)


def pallas_mlp_block(x, g, bln, w1, b1, w2, b2, *, eps=1e-5, out_dtype=jnp.bfloat16, tm=256):
    M, D = x.shape
    F = w1.shape[1]
    TM = _sublane_tile(M, tm)
    kern = functools.partial(_mlp_block_kernel, eps=eps)
    return pl.pallas_call(
        kern,
        out_shape=jax.ShapeDtypeStruct((M, D), out_dtype),
        grid=(M // TM,),
        in_specs=[
            pl.BlockSpec((TM, D), lambda i: (i, 0)),            # residual input
            pl.BlockSpec((1, D), lambda i: (0, 0)),             # LN gamma (grid-invariant)
            pl.BlockSpec((1, D), lambda i: (0, 0)),             # LN beta
            pl.BlockSpec((D, F), lambda i: (0, 0)),             # fc1 weight
            pl.BlockSpec((1, F), lambda i: (0, 0)),             # fc1 bias
            pl.BlockSpec((F, D), lambda i: (0, 0)),             # fc2 weight
            pl.BlockSpec((1, D), lambda i: (0, 0)),             # fc2 bias
        ],
        out_specs=pl.BlockSpec((TM, D), lambda i: (i, 0)),
        compiler_params=pltpu.CompilerParams(dimension_semantics=("parallel",)),
    )(x, g.reshape(1, D), bln.reshape(1, D), w1, b1.reshape(1, F), w2, b2.reshape(1, D))


# ------------------------- parameters & forward -----------------------------


def init_params(key, *, in_chans, patch, dim, depth, heads, mlp_dim, n_patches):
    wdt = jnp.bfloat16  # matmul operands in bf16 (MXU path); LN params / biases in f32

    def dense(k, fan_in, fan_out):
        w = (jax.random.normal(k, (fan_in, fan_out), jnp.float32) * 0.02).astype(wdt)
        b = jnp.zeros((fan_out,), jnp.float32)
        return w, b

    keys = jax.random.split(key, 2 + depth)
    params = {}
    params["patch_w"], params["patch_b"] = dense(keys[0], in_chans * patch * patch, dim)
    params["pos"] = jax.random.normal(keys[1], (1, n_patches, dim), jnp.float32) * 0.02
    layers = []
    for l in range(depth):
        lk = jax.random.split(keys[2 + l], 4)
        wqkv, bqkv = dense(lk[0], dim, 3 * dim)     # fused Q/K/V weight [D, 3D]
        wo, bo = dense(lk[1], dim, dim)
        wfc1, bfc1 = dense(lk[2], dim, mlp_dim)
        wfc2, bfc2 = dense(lk[3], mlp_dim, dim)
        layers.append(dict(
            ln1_g=jnp.ones((dim,), jnp.float32), ln1_b=jnp.zeros((dim,), jnp.float32),
            w_qkv=wqkv, b_qkv=bqkv, w_o=wo, b_o=bo,
            ln2_g=jnp.ones((dim,), jnp.float32), ln2_b=jnp.zeros((dim,), jnp.float32),
            w_fc1=wfc1, b_fc1=bfc1, w_fc2=wfc2, b_fc2=bfc2,
        ))
    params["layers"] = layers
    return params


def vision_encoder_forward(params, x, *, patch, heads):
    """x: [B, C, H, W] float32 (NCHW).  Returns last hidden state [B, N, D] float32."""
    B, C, H, W = x.shape
    ph, pw = H // patch, W // patch
    N = ph * pw
    D = params["patch_w"].shape[1]

    # Patchify (glue): pixel order (c, py, px) matches Conv2d(weight.view(D, -1)).
    patches = x.reshape(B, C, ph, patch, pw, patch)
    patches = (patches.transpose(0, 2, 4, 1, 3, 5)
                      .reshape(B * N, C * patch * patch)
                      .astype(jnp.bfloat16))

    # Patch embedding (stride-`patch` conv as matmul) with the pos-emb add fused in.
    pos = jnp.broadcast_to(params["pos"], (B, N, D)).reshape(B * N, D)
    h = pallas_linear_residual(patches, params["patch_w"], params["patch_b"], pos)

    for layer in params["layers"]:
        # --- fused attention block: LN + QKV + MHA + o-proj + residual (1 call) ---
        h = pallas_attn_block(h.reshape(B, N, D),
                              layer["ln1_g"], layer["ln1_b"],
                              layer["w_qkv"], layer["b_qkv"],
                              layer["w_o"], layer["b_o"], heads=heads)
        # --- fused MLP block: LN + fc1 + GELU + fc2 + residual (1 call) ---
        h = pallas_mlp_block(h.reshape(B * N, D),
                             layer["ln2_g"], layer["ln2_b"],
                             layer["w_fc1"], layer["b_fc1"],
                             layer["w_fc2"], layer["b_fc2"])

    # hidden_states[-1]: output of the last transformer layer (no final LN applied).
    return h.reshape(B, N, D).astype(jnp.float32)


# ---------------------------------- main -------------------------------------

if __name__ == "__main__":
    key = jax.random.PRNGKey(0)
    B, C, H, W = 2, 4, 16, 16
    patch, dim, depth, heads, mlp_dim = 4, 32, 2, 4, 64
    n_patches = (H // patch) * (W // patch)

    kp, kx = jax.random.split(key)
    params = init_params(kp, in_chans=C, patch=patch, dim=dim, depth=depth,
                         heads=heads, mlp_dim=mlp_dim, n_patches=n_patches)
    x = jax.random.normal(kx, (B, C, H, W), jnp.float32)

    out = vision_encoder_forward(params, x, patch=patch, heads=heads)
    jax.block_until_ready(out)
    assert out.shape == (B, n_patches, dim) and out.dtype == jnp.float32
    assert bool(jnp.all(jnp.isfinite(out)))
    # TODO(synk): loading an actual pre-trained HF vision checkpoint has no Pallas
    # equivalent; weights are deterministic synthetic initializations instead.
    print("KERNEL_OK")
</pallas_src>

<mosaic_0001>
module attributes {stable_mosaic.version = 11 : i64} {
  func.func @_linear_residual_kernel(%arg0: i32, %arg1: i32, %arg2: memref<32x64xbf16, #tpu.memory_space<vmem>>, %arg3: memref<64x32xbf16, #tpu.memory_space<vmem>>, %arg4: memref<1x32xf32, #tpu.memory_space<vmem>>, %arg5: memref<32x32xf32, #tpu.memory_space<vmem>>, %arg6: memref<32x32xbf16, #tpu.memory_space<vmem>>) attributes {dimension_semantics = [#tpu.dimension_semantics<parallel>, #tpu.dimension_semantics<parallel>], iteration_bounds = array<i64: 1, 1>, scalar_prefetch = 0 : i64, scratch_operands = 0 : i64, tpu.core_type = #tpu.core_type<tc>, window_params = [{transform_indices = @transform_0, window_bounds = array<i64: 32, 64>}, {transform_indices = @transform_1, window_bounds = array<i64: 64, 32>}, {transform_indices = @transform_2, window_bounds = array<i64: 1, 32>}, {transform_indices = @transform_3, window_bounds = array<i64: 32, 32>}, {transform_indices = @transform_4, window_bounds = array<i64: 32, 32>}]} {
    %c0 = arith.constant 0 : index
    %c0_0 = arith.constant 0 : index
    %0 = vector.load %arg2[%c0, %c0_0] : memref<32x64xbf16, #tpu.memory_space<vmem>>, vector<32x64xbf16>
    %c0_1 = arith.constant 0 : index
    %c0_2 = arith.constant 0 : index
    %1 = vector.load %arg3[%c0_1, %c0_2] : memref<64x32xbf16, #tpu.memory_space<vmem>>, vector<64x32xbf16>
    %cst = arith.constant dense<0.000000e+00> : vector<32x32xf32>
    %2 = tpu.matmul %0, %1, %cst {dimension_numbers = #tpu.dot_dimension_numbers<[1], [0], [0], [1], [0, 0, 1, 1], [], []>} : vector<32x64xbf16>, vector<64x32xbf16>, vector<32x32xf32> -> vector<32x32xf32>
    %c0_3 = arith.constant 0 : index
    %c0_4 = arith.constant 0 : index
    %3 = vector.load %arg4[%c0_3, %c0_4] : memref<1x32xf32, #tpu.memory_space<vmem>>, vector<1x32xf32>
    %4 = vector.broadcast %3 : vector<1x32xf32> to vector<32x32xf32>
    %5 = arith.addf %2, %4 : vector<32x32xf32>
    %c0_5 = arith.constant 0 : index
    %c0_6 = arith.constant 0 : index
    %6 = vector.load %arg5[%c0_5, %c0_6] : memref<32x32xf32, #tpu.memory_space<vmem>>, vector<32x32xf32>
    %7 = arith.addf %5, %6 : vector<32x32xf32>
    %8 = arith.truncf %7 : vector<32x32xf32> to vector<32x32xbf16>
    %c0_7 = arith.constant 0 : index
    %c0_8 = arith.constant 0 : index
    %9 = vector.load %arg6[%c0_7, %c0_8] : memref<32x32xbf16, #tpu.memory_space<vmem>>, vector<32x32xbf16>
    tpu.vector_store %arg6[%c0_7, %c0_8], %8 {strides = array<i32>} : memref<32x32xbf16, #tpu.memory_space<vmem>>, vector<32x32xbf16>,
    return
  }
  func.func @transform_0(%arg0: i32, %arg1: i32) -> (i32, i32) {
    %c0_i32 = arith.constant 0 : i32
    %c0_i32_0 = arith.constant 0 : i32
    return %arg0, %c0_i32 : i32, i32
  }
  func.func @transform_1(%arg0: i32, %arg1: i32) -> (i32, i32) {
    %c0_i32 = arith.constant 0 : i32
    %c0_i32_0 = arith.constant 0 : i32
    return %c0_i32, %arg1 : i32, i32
  }
  func.func @transform_2(%arg0: i32, %arg1: i32) -> (i32, i32) {
    %c0_i32 = arith.constant 0 : i32
    %c0_i32_0 = arith.constant 0 : i32
    return %c0_i32, %arg1 : i32, i32
  }
  func.func @transform_3(%arg0: i32, %arg1: i32) -> (i32, i32) {
    %c0_i32 = arith.constant 0 : i32
    return %arg0, %arg1 : i32, i32
  }
  func.func @transform_4(%arg0: i32, %arg1: i32) -> (i32, i32) {
    %c0_i32 = arith.constant 0 : i32
    return %arg0, %arg1 : i32, i32
  }
}

</mosaic_0001>

<llo_original>
// kernel: tpu_custom_call.1
$region0: #{tpu_custom_call.1}
  #allocation0 [shape = 'u32[]', space=smem, size = 0x4, offset = 0x4, fixed_abs, tag = 'smem constant byte address 0x4 - core index']
  #allocation1 [shape = 'u32[144,128]{1,0:T(1,128)}', space=vmem, size = 0x12000, scoped, tag = 'internal scratch']
  %s0 = inlined_call_operand.vmem [shape: bf16[32,64], index: 0, kind: input, shape index: {}]
  %s1 = inlined_call_operand.vmem [shape: bf16[64,32], index: 1, kind: input, shape index: {}]
  %s2 = inlined_call_operand.vmem [shape: f32[1,32], index: 2, kind: input, shape index: {}]
  %s3 = inlined_call_operand.vmem [shape: f32[32,32], index: 3, kind: input, shape index: {}]
  %s4 = inlined_call_operand.hbm [shape: bf16[32,32], index: 4, kind: output, shape index: {}]
  %s5 = sld [smem:[#allocation0]]
  $region26: #{tpu_custom_call.1} parent=0
    _
  %s7 = ssub.s32 1, %s5
  %s8 = scalar_select 0, %s7, %s5
  $region1: #{tpu_custom_call.1} parent=0
    #allocation2 [shape = 'u8[8192]{0}', space=vmem, size = 0x2000, scoped, tag = 'output window, operand 0, single buffered']
    #allocation3 [shape = 's32[1]{0}', space=sflag, size = 0x4, scoped, tag = 'scoped memory for tpu_custom_call.1']
    %9 = vsyncpa [#allocation3], 0
    // Predicated region
    $region2: #{tpu_custom_call.1} parent=1 // pred_check
      _
    $region3: #{tpu_custom_call.1} parent=1 // pred_check_branch
      %11 = sbr.rel (0) target = $region5
    $region4: #{tpu_custom_call.1} parent=1 // pred_region
      _
    $region5: #{tpu_custom_call.1} parent=1 // pred_fallthru
      _
    // Predicated region
    $region6: #{tpu_custom_call.1} parent=1 // pred_check
      _
    $region7: #{tpu_custom_call.1} parent=1 // pred_check_branch
      %13 = sbr.rel (0) target = $region9
    $region8: #{tpu_custom_call.1} parent=1 // pred_region
      _
    $region9: #{tpu_custom_call.1} parent=1 // pred_fallthru
      _
    // Predicated region
    $region10: #{tpu_custom_call.1} parent=1 // pred_check
      _
    $region11: #{tpu_custom_call.1} parent=1 // pred_check_branch
      %15 = sbr.rel (0) target = $region13
    $region12: #{tpu_custom_call.1} parent=1 // pred_region
      _
    $region13: #{tpu_custom_call.1} parent=1 // pred_fallthru
      _
    // Predicated region
    $region14: #{tpu_custom_call.1} parent=1 // pred_check
      _
    $region15: #{tpu_custom_call.1} parent=1 // pred_check_branch
      %17 = sbr.rel (0) target = $region17
    $region16: #{tpu_custom_call.1} parent=1 // pred_region
      _
    $region17: #{tpu_custom_call.1} parent=1 // pred_fallthru
      _
    %v19 = vld [vmem:[%s0] sm:$0xf]
    %v20 = vld [vmem:[%s0 + $0x4] sm:$0xf]
    %v21 = vld [vmem:[%s0 + $0x8] sm:$0xf]
    %v22 = vld [vmem:[%s0 + $0xc] sm:$0xf]
    %v23 = vld [vmem:[%s1] sm:$0xf]
    %v24 = vld [vmem:[%s1 + $0x4] sm:$0xf]
    %v25 = vld [vmem:[%s1 + $0x8] sm:$0xf]
    %v26 = vld [vmem:[%s1 + $0xc] sm:$0xf]
    %v27 = vld [vmem:[%s1 + $0x10] sm:$0xf]
    %v28 = vld [vmem:[%s1 + $0x14] sm:$0xf]
    %v29 = vld [vmem:[%s1 + $0x18] sm:$0xf]
    %v30 = vld [vmem:[%s1 + $0x1c] sm:$0xf]
    %v31 = vld [vmem:[%s2] sm:$0x1]
    %v33 = vlaneseq
    %v34 = vshrl.u32 %v33, 7
    %v35 = vsub.s32 0, %v34
    %v36 = vrot.slane %v31, %v35
    %v42 = vunpack.c.l.b16 %v19
    %v43 = vunpack.c.l.b16 %v20
    %v44 = vunpack.c.l.b16 %v21
    %v45 = vunpack.c.l.b16 %v22
    %v46 = vpack.c.b16 %v43, %v42
    %v47 = vpack.c.b16 %v45, %v44
    %v56 = vunpack.c.l.b16 %v23
    %v57 = vunpack.c.l.b16 %v24
    %v58 = vunpack.c.l.b16 %v25
    %v59 = vunpack.c.l.b16 %v26
    %v60 = vunpack.c.l.b16 %v27
    %v61 = vunpack.c.l.b16 %v28
    %v62 = vunpack.c.l.b16 %v29
    %v63 = vunpack.c.l.b16 %v30
    %v64 = vpack.c.b16 %v57, %v56
    %v65 = vpack.c.b16 %v59, %v58
    %v66 = vpack.c.b16 %v61, %v60
    %v67 = vpack.c.b16 %v63, %v62
    %vm72 = vcmask 523264
    %v74 = vsel %vm72, %v46, 0
    %v77 = vsel %vm72, %v47, 0
    %79 = vmatprep.subr.bf16.mxu0 0
    %80 = vmatpush1.bf16.msra.mxu0 0
    %81 = vmatprep.subr.bf16.mxu0 0
    %82 = vmatpush1.bf16.msra.mxu0 0
    %83 = vmatprep.subr.bf16.mxu0 0
    %84 = vmatpush1.bf16.msra.mxu0 0
    %85 = vmatprep.subr.bf16.mxu0 0
    %86 = vmatpush1.bf16.msra.mxu0 0
    %87 = vmatprep.subr.bf16.mxu0 0
    %88 = vmatpush1.bf16.msra.mxu0 %v67
    %89 = vmatprep.subr.bf16.mxu0 0
    %90 = vmatpush1.bf16.msra.mxu0 %v66
    %91 = vmatprep.subr.bf16.mxu0 0
    %92 = vmatpush1.bf16.msra.mxu0 %v65
    %93 = vmatprep.subr.bf16.mxu0 0
    %94 = vmatpush1.bf16.msra.mxu0 %v64
    %95 = vmatprep.subr.bf16.mxu0 0
    %96 = vmatpush2.bf16.msra.mxu0 0
    %97 = vmatprep.subr.bf16.mxu0 0
    %98 = vmatpush2.bf16.msra.mxu0 0
    %99 = vmatprep.subr.bf16.mxu0 0
    %100 = vmatpush2.bf16.msra.mxu0 0
    %101 = vmatprep.subr.bf16.mxu0 0
    %102 = vmatpush2.bf16.msra.mxu0 0
    %103 = vmatprep.subr.bf16.mxu0 0
    %104 = vmatpush2.bf16.msra.mxu0 0
    %105 = vmatprep.subr.bf16.mxu0 0
    %106 = vmatpush2.bf16.msra.mxu0 0
    %107 = vmatprep.subr.bf16.mxu0 0
    %108 = vmatpush2.bf16.msra.mxu0 0
    %109 = vmatprep.subr.bf16.mxu0 0
    %110 = vmatpush2.bf16.msra.mxu0 0
    %111 = vmatprep.mubr.bf16.mxu0 0
    %112 = vmatmul.mubr.bf16.gmra.mxu0 %v74
    %v113 = vpop.f32.mrf.mxu0
    %v114 = vadd.f32 %v36, %v113
    %v115 = vpop.f32.mrf.mxu0
    %v116 = vpop.f32.mrf.mxu0
    %v117 = vadd.f32 %v36, %v116
    %v118 = vpop.f32.mrf.mxu0
    %119 = vmatprep.mubr.bf16.mxu0 0
    %120 = vmatmul.mubr.bf16.gmra.mxu0 %v77
    %v121 = vpop.f32.mrf.mxu0
    %v122 = vadd.f32 %v36, %v121
    %v123 = vpop.f32.mrf.mxu0
    %v124 = vpop.f32.mrf.mxu0
    %v125 = vadd.f32 %v36, %v124
    %v126 = vpop.f32.mrf.mxu0
    %127 = vdwg.mxu0
    %v128 = vld [vmem:[%s3] sm:$0xff]
    %v129 = vld [vmem:[%s3 + $0x8] sm:$0xff]
    %v130 = vld [vmem:[%s3 + $0x10] sm:$0xff]
    %v131 = vld [vmem:[%s3 + $0x18] sm:$0xff]
    %v132 = vadd.f32 %v114, %v128
    %v133 = vadd.f32 %v117, %v129
    %v134 = vadd.f32 %v122, %v130
    %v135 = vadd.f32 %v125, %v131
    %v136 = vpack.c.bf16 %v133, %v132
    %v137 = vpack.c.bf16 %v135, %v134
    %v140 = vunpack.c.l.b16 %v136
    %v141 = vunpack.c.h.b16 %v136
    %v142 = vunpack.c.l.b16 %v137
    %v143 = vunpack.c.h.b16 %v137
    %v144 = vpack.c.b16 %v140, %v140
    %v145 = vpack.c.b16 %v141, %v141
    %v146 = vpack.c.b16 %v142, %v142
    %v147 = vpack.c.b16 %v143, %v143
    %vm152 = vcmask 257024
    %153 = vst.msk [vmem:[#allocation2] sm:$0xf] %vm152, %v144
    %154 = vst.msk [vmem:[#allocation2 + $0x4] sm:$0xf] %vm152, %v145
    %155 = vst.msk [vmem:[#allocation2 + $0x8] sm:$0xf] %vm152, %v146
    %156 = vst.msk [vmem:[#allocation2 + $0xc] sm:$0xf] %vm152, %v147
    // Predicated region
    $region18: #{tpu_custom_call.1} parent=1 // pred_check
      _
    $region19: #{tpu_custom_call.1} parent=1 // pred_check_branch
      %158 = sbr.rel (0) target = $region21
    $region20: #{tpu_custom_call.1} parent=1 // pred_region
      %s160 = ssub.s32 256, 256
      %161 = vsyncadd [#allocation3], %s160
      %s162 = sshll.u32 [#allocation2], 4
      %s163 = int_to_ptr.vmem [resolvable:$true] %s162
      %168 = dma.vmem_to_hbm [thread:$0]  %s163, 256, %s4, [#allocation3], 64, 64, 4
    $region21: #{tpu_custom_call.1} parent=1 // pred_fallthru
      _
    // Predicated region
    $region22: #{tpu_custom_call.1} parent=1 // pred_check
      _
    $region23: #{tpu_custom_call.1} parent=1 // pred_check_branch
      %170 = sbr.rel (0) target = $region25
    $region24: #{tpu_custom_call.1} parent=1 // pred_region
      %171 = dma.done [#allocation3], 256
    $region25: #{tpu_custom_call.1} parent=1 // pred_fallthru
      _
    %172 = vsyncpa [#allocation3], 1

</llo_original>
